<compile_context>
chip_gen: v7x
topology: tpu7x:2x2x1
jax: 0.10.0
libtpu: 0.0.40
codegen_flags: <defaults>
</compile_context>

<pallas_src>
import jax
import jax.numpy as jnp
from jax.experimental import pallas as pl
from jax.experimental.pallas import tpu as pltpu


def _vmem_capacity_bytes():
    try:
        return int(pltpu.get_tpu_info().vmem_capacity_bytes)
    except Exception:
        return 64 * 1024 * 1024  # conservative (v7x-sized) fallback


_VMEM_BYTES = _vmem_capacity_bytes()
_VMEM_LIMIT_BYTES = max(32 * 1024 * 1024,
                        min(_VMEM_BYTES - 16 * 1024 * 1024, 100 * 1024 * 1024))


def _supports_bf16_valu():
    """bf16 VPU exists on v6e/v7x; v5e (and older) lack it -> f32 epilogue."""
    try:
        kind = jax.devices()[0].device_kind.lower()
    except Exception:
        return True
    for tag in ("v2", "v3", "v4", "v5 lite", "v5e", "v5litepod", "v5p"):
        if tag in kind:
            return False
    return True


def _choose_point_tile(n, c_widths, c_in_total, in_bytes, weight_bytes,
                       requested=None):
    """Pick the point-axis (lane) tile TN. Returns (tn, num_tiles, needs_mask)."""
    if requested is None:
        widest = max(c_widths)
        # Per-point-column live bytes: double-buffered input tiles plus a few
        # live copies of the widest activation slab (conservative f32 estimate).
        per_col = 2 * in_bytes * c_in_total + 12 * widest
        budget = int(0.6 * _VMEM_LIMIT_BYTES) - 2 * weight_bytes
        budget = max(budget, 4 * 1024 * 1024)
        tn = budget // max(per_col, 1)
        tn = max(256, min(4096, (tn // 256) * 256))
    else:
        tn = int(requested)
    if n <= tn:
        return n, 1, False  # single full-N tile (block == full dim: always legal)
    assert tn % 128 == 0, "point tile must be a multiple of 128 when tiling N"
    num_tiles = -(-n // tn)
    return tn, num_tiles, (n % tn) != 0


def _make_mlp_max_kernel(num_inputs, num_layers, tn, n_valid, needs_mask,
                         hidden_dt):
    def kernel(*args):
        x_refs = args[:num_inputs]                       # (1, c_i, TN)
        w0_refs = args[num_inputs:2 * num_inputs]        # (C0, c_i) bf16
        b0_ref = args[2 * num_inputs]                    # (C0, 1)
        rest = args[2 * num_inputs + 1:
                    2 * num_inputs + 1 + 2 * (num_layers - 1)]
        out_ref = args[-2]                               # (1, 1, C_last)
        acc_ref = args[-1]                               # (C_last, 1) f32 scratch

        j = pl.program_id(1)
        last = pl.num_programs(1) - 1

        @pl.when(j == 0)
        def _init():
            acc_ref[...] = jnp.full(acc_ref.shape, -jnp.inf, acc_ref.dtype)

        # Layer 0: split over the separate feature inputs (no HBM concat).
        # K is tiny (3 + f); accumulate the partial products in f32.
        h = None
        for xi in range(num_inputs):
            x = x_refs[xi][0].astype(jnp.bfloat16)       # (c_i, TN)
            d = jnp.dot(w0_refs[xi][...], x, preferred_element_type=jnp.float32)
            h = d if h is None else h + d
        if num_layers > 1:                               # hidden layer: BN+relu folded
            h = jnp.maximum(h.astype(hidden_dt) + b0_ref[...], 0.0)
        else:                                            # only layer == last layer
            h = h + b0_ref[...]

        # Hidden layers 1..L-2: bf16 MXU matmul, epilogue in hidden_dt
        # (bf16 on v6e/v7x, f32 on v5e).
        for li in range(num_layers - 2):
            w = rest[2 * li][...]                        # (C_out, C_in) bf16
            b = rest[2 * li + 1][...]                    # (C_out, 1) hidden_dt
            h = jnp.dot(w, h.astype(jnp.bfloat16),
                        preferred_element_type=hidden_dt)
            h = jnp.maximum(h + b, 0.0)

        # Last layer (no BN, no activation): f32 accumulate + f32 bias.
        if num_layers > 1:
            w = rest[2 * (num_layers - 2)][...]
            b = rest[2 * (num_layers - 2) + 1][...]
            h = jnp.dot(w, h.astype(jnp.bfloat16),
                        preferred_element_type=jnp.float32) + b

        def _accum(vals):
            acc_ref[...] = jnp.maximum(
                acc_ref[...], jnp.max(vals, axis=-1, keepdims=True))

        if needs_mask:
            # Inputs are NOT padded in the wrapper; the last tile's tail is
            # stale VMEM.  Mask it to -inf -- but only on the last tile, so the
            # iota/compare/select never runs on interior tiles.
            @pl.when(j != last)
            def _acc_body():
                _accum(h)

            @pl.when(j == last)
            def _acc_tail():
                col = j * tn + jax.lax.broadcasted_iota(jnp.int32, h.shape, 1)
                _accum(jnp.where(col < n_valid, h, -jnp.inf))
        else:
            _accum(h)

        # Final tile: store lane-dense (channels on the lane axis).
        @pl.when(j == last)
        def _store():
            out_ref[0] = jnp.transpose(acc_ref[...]).astype(out_ref.dtype)

    return kernel


def prepare_params(weights, biases, feat_channels, bf16_epilogue):
    """One-time (outside the per-call path) weight/bias preparation:
    bf16 weight cast, first-layer weight split per feature input, (C,1) biases
    in the epilogue dtype (hidden) / f32 (last layer)."""
    num_layers = len(weights)
    hidden_dt = jnp.bfloat16 if bf16_epilogue else jnp.float32

    w0 = jnp.asarray(weights[0], jnp.float32)
    assert w0.shape[1] == sum(feat_channels)
    w0_splits, off = [], 0
    for c in feat_channels:
        w0_splits.append(w0[:, off:off + c].astype(jnp.bfloat16))
        off += c
    b0_dt = hidden_dt if num_layers > 1 else jnp.float32
    b0 = jnp.asarray(biases[0], jnp.float32).reshape(-1, 1).astype(b0_dt)

    rest = []
    for i in range(1, num_layers):
        w = jnp.asarray(weights[i], jnp.float32).astype(jnp.bfloat16)
        dt = hidden_dt if i < num_layers - 1 else jnp.float32
        b = jnp.asarray(biases[i], jnp.float32).reshape(-1, 1).astype(dt)
        rest.append((w, b))

    return dict(w0_splits=w0_splits, b0=b0, rest=rest,
                c_widths=[int(w.shape[0]) for w in weights],
                feat_channels=list(feat_channels),
                bf16_epilogue=bool(bf16_epilogue))


def mlp_max_pallas(feats, params, *, point_tile=None):
    """feats: list of (B, c_i, N) arrays (f32 or bf16) whose channels
    concatenate to the MLP input.  Returns (B, C_out) f32
    == max_n MLP(concat(feats))[:, :, n]."""
    num_inputs = len(feats)
    B, _, N = feats[0].shape
    c_ins = [f.shape[1] for f in feats]

    w0_splits = params["w0_splits"]
    rest = params["rest"]
    assert len(w0_splits) == num_inputs
    for w, c in zip(w0_splits, c_ins):
        assert w.shape[1] == c
    num_layers = 1 + len(rest)
    C_out = rest[-1][0].shape[0] if rest else w0_splits[0].shape[0]
    hidden_dt = jnp.bfloat16 if params["bf16_epilogue"] else jnp.float32

    in_bytes = max(jnp.dtype(f.dtype).itemsize for f in feats)
    weight_bytes = (sum(int(w.size) * 2 for w in w0_splits)
                    + sum(int(w.size) * 2 for w, _ in rest))
    tn, num_tiles, needs_mask = _choose_point_tile(
        N, params["c_widths"], sum(c_ins), in_bytes, weight_bytes,
        requested=point_tile)

    args, in_specs = [], []
    for f, c in zip(feats, c_ins):
        args.append(f)
        in_specs.append(pl.BlockSpec((1, c, tn), lambda b, j: (b, 0, j)))
    for w in w0_splits:
        args.append(w)
        in_specs.append(pl.BlockSpec(w.shape, lambda b, j: (0, 0)))
    args.append(params["b0"])
    in_specs.append(pl.BlockSpec(params["b0"].shape, lambda b, j: (0, 0)))
    for w, b in rest:
        args.append(w)
        in_specs.append(pl.BlockSpec(w.shape, lambda b, j: (0, 0)))
        args.append(b)
        in_specs.append(pl.BlockSpec(b.shape, lambda b, j: (0, 0)))

    kernel = _make_mlp_max_kernel(num_inputs, num_layers, tn, N, needs_mask,
                                  hidden_dt)

    out = pl.pallas_call(
        kernel,
        out_shape=jax.ShapeDtypeStruct((B, 1, C_out), jnp.float32),
        grid=(B, num_tiles),
        in_specs=in_specs,
        out_specs=pl.BlockSpec((1, 1, C_out), lambda b, j: (b, 0, 0)),
        scratch_shapes=[pltpu.VMEM((C_out, 1), jnp.float32)],
        compiler_params=pltpu.CompilerParams(
            dimension_semantics=("parallel", "arbitrary"),
            vmem_limit_bytes=_VMEM_LIMIT_BYTES,
        ),
    )(*args)
    return out.reshape(B, C_out)


def init_params(key, in_channel, mlp, use_xyz=True):
    """Deterministic synthetic params; BN (inference mode) folded into conv."""
    if use_xyz:
        in_channel += 3
    last = in_channel
    weights, biases = [], []
    eps = 1e-5
    for i, out_c in enumerate(mlp):
        key, k1, k2, k3, k4, k5 = jax.random.split(key, 6)
        w = 0.1 * jax.random.normal(k1, (out_c, last), jnp.float32)
        b = 0.1 * jax.random.normal(k2, (out_c,), jnp.float32)
        if i < len(mlp) - 1:
            gamma = 1.0 + 0.1 * jax.random.normal(k3, (out_c,), jnp.float32)
            beta = 0.1 * jax.random.normal(k4, (out_c,), jnp.float32)
            running_mean = 0.1 * jax.random.normal(k5, (out_c,), jnp.float32)
            running_var = jnp.ones((out_c,), jnp.float32)
            scale = gamma / jnp.sqrt(running_var + eps)
            w = scale[:, None] * w
            b = scale * (b - running_mean) + beta
        weights.append(w)
        biases.append(b)
        last = out_c
    return weights, biases


def pointnet_sa_module_knn_forward(xyz, points, params,
                                   use_xyz=True, if_idx=False, point_tile=None):
    """group_all path of PointNet_SA_Module_KNN."""
    B, _, N = xyz.shape
    new_xyz = jnp.zeros((B, 3, 1), jnp.float32)
    idx = jnp.broadcast_to(jnp.arange(N, dtype=jnp.int32).reshape(1, 1, N),
                           (B, 1, N))
    if points is not None:
        feats = [xyz, points] if use_xyz else [points]
    else:
        feats = [xyz]
    new_points = mlp_max_pallas(feats, params, point_tile=point_tile)
    new_points = new_points[:, :, None]          # (B, mlp[-1], 1)
    if if_idx:
        return new_xyz, new_points, idx
    return new_xyz, new_points


def _reference(xyz, points, weights, biases, use_xyz=True):
    x = jnp.concatenate([xyz, points], axis=1) if use_xyz else points
    h = x
    n = len(weights)
    for i, (w, b) in enumerate(zip(weights, biases)):
        h = jnp.einsum("oc,bcn->bon", w, h) + b[None, :, None]
        if i < n - 1:
            h = jnp.maximum(h, 0.0)
    return jnp.max(h, axis=-1, keepdims=True)


if __name__ == "__main__":
    key = jax.random.PRNGKey(0)
    B, f = 2, 4
    mlp = [16, 32]

    key, kw = jax.random.split(key)
    weights, biases = init_params(kw, in_channel=f, mlp=mlp, use_xyz=True)
    # One-time parameter preparation (bf16 casts / reshapes hoisted out of the
    # per-call path; epilogue dtype chosen per chip generation).
    params = prepare_params(weights, biases, feat_channels=[3, f],
                            bf16_epilogue=_supports_bf16_valu())

    # Case 1: tiny N, single full-N tile.
    # Case 2: N not a multiple of the 128-tile -> multi-tile grid, running-max
    #         accumulator and (last-tile-only) stale-tail masking are exercised.
    for N, tile in [(16, None), (300, 128)]:
        key, kx, kp = jax.random.split(key, 3)
        xyz = jax.random.normal(kx, (B, 3, N), jnp.float32)
        points = jax.random.normal(kp, (B, f, N), jnp.float32)

        new_xyz, new_points, idx = pointnet_sa_module_knn_forward(
            xyz, points, params, use_xyz=True, if_idx=True, point_tile=tile)
        new_points = jax.block_until_ready(new_points)

        ref = _reference(xyz, points, weights, biases, use_xyz=True)
        assert new_xyz.shape == (B, 3, 1)
        assert new_points.shape == (B, mlp[-1], 1)
        assert idx.shape == (B, 1, N)
        # bf16 matmuls (+ bf16 hidden epilogue on v6e/v7x) -> looser tolerance.
        assert jnp.allclose(new_points, ref, atol=2e-2, rtol=2e-2), (
            float(jnp.max(jnp.abs(new_points - ref))))

    print("KERNEL_OK")
</pallas_src>

<mosaic_0001>
module attributes {stable_mosaic.version = 11 : i64} {
  func.func @kernel(%arg0: i32, %arg1: i32, %arg2: memref<1x3x16xf32, #tpu.memory_space<vmem>>, %arg3: memref<1x4x16xf32, #tpu.memory_space<vmem>>, %arg4: memref<16x3xbf16, #tpu.memory_space<vmem>>, %arg5: memref<16x4xbf16, #tpu.memory_space<vmem>>, %arg6: memref<16x1xbf16, #tpu.memory_space<vmem>>, %arg7: memref<32x16xbf16, #tpu.memory_space<vmem>>, %arg8: memref<32x1xf32, #tpu.memory_space<vmem>>, %arg9: memref<1x1x32xf32, #tpu.memory_space<vmem>>, %arg10: memref<32x1xf32, #tpu.memory_space<vmem>>) attributes {dimension_semantics = [#tpu.dimension_semantics<parallel>, #tpu.dimension_semantics<arbitrary>], iteration_bounds = array<i64: 2, 1>, scalar_prefetch = 0 : i64, scratch_operands = 1 : i64, tpu.core_type = #tpu.core_type<tc>, window_params = [{transform_indices = @transform_0, window_bounds = array<i64: 1, 3, 16>}, {transform_indices = @transform_1, window_bounds = array<i64: 1, 4, 16>}, {pipeline_mode = #tpu.pipeline_mode<synchronous>, transform_indices = @transform_2, window_bounds = array<i64: 16, 3>}, {pipeline_mode = #tpu.pipeline_mode<synchronous>, transform_indices = @transform_3, window_bounds = array<i64: 16, 4>}, {pipeline_mode = #tpu.pipeline_mode<synchronous>, transform_indices = @transform_4, window_bounds = array<i64: 16, 1>}, {pipeline_mode = #tpu.pipeline_mode<synchronous>, transform_indices = @transform_5, window_bounds = array<i64: 32, 16>}, {pipeline_mode = #tpu.pipeline_mode<synchronous>, transform_indices = @transform_6, window_bounds = array<i64: 32, 1>}, {transform_indices = @transform_7, window_bounds = array<i64: 1, 1, 32>}]} {
    %c0_i32 = arith.constant 0 : i32
    %0 = arith.cmpi eq, %arg1, %c0_i32 : i32
    %1 = arith.extui %0 : i1 to i32
    %c0_i32_0 = arith.constant 0 : i32
    %2 = arith.cmpi ne, %1, %c0_i32_0 : i32
    scf.if %2 {
      %cst_26 = arith.constant 0xFF800000 : f32
      %33 = vector.broadcast %cst_26 : f32 to vector<32x1xf32>
      %c0_27 = arith.constant 0 : index
      %c0_28 = arith.constant 0 : index
      %34 = vector.load %arg10[%c0_27, %c0_28] : memref<32x1xf32, #tpu.memory_space<vmem>>, vector<32x1xf32>
      tpu.vector_store %arg10[%c0_27, %c0_28], %33 {strides = array<i32>} : memref<32x1xf32, #tpu.memory_space<vmem>>, vector<32x1xf32>,
    } else {
    }
    %c0 = arith.constant 0 : index
    %c0_1 = arith.constant 0 : index
    %c0_2 = arith.constant 0 : index
    %3 = vector.load %arg2[%c0, %c0_1, %c0_2] : memref<1x3x16xf32, #tpu.memory_space<vmem>>, vector<1x3x16xf32>
    %4 = vector.shape_cast %3 : vector<1x3x16xf32> to vector<3x16xf32>
    %5 = arith.truncf %4 : vector<3x16xf32> to vector<3x16xbf16>
    %c0_3 = arith.constant 0 : index
    %c0_4 = arith.constant 0 : index
    %6 = vector.load %arg4[%c0_3, %c0_4] : memref<16x3xbf16, #tpu.memory_space<vmem>>, vector<16x3xbf16>
    %cst = arith.constant dense<0.000000e+00> : vector<16x16xf32>
    %7 = tpu.matmul %6, %5, %cst {dimension_numbers = #tpu.dot_dimension_numbers<[1], [0], [0], [1], [0, 0, 1, 1], [], []>} : vector<16x3xbf16>, vector<3x16xbf16>, vector<16x16xf32> -> vector<16x16xf32>
    %c0_5 = arith.constant 0 : index
    %c0_6 = arith.constant 0 : index
    %c0_7 = arith.constant 0 : index
    %8 = vector.load %arg3[%c0_5, %c0_6, %c0_7] : memref<1x4x16xf32, #tpu.memory_space<vmem>>, vector<1x4x16xf32>
    %9 = vector.shape_cast %8 : vector<1x4x16xf32> to vector<4x16xf32>
    %10 = arith.truncf %9 : vector<4x16xf32> to vector<4x16xbf16>
    %c0_8 = arith.constant 0 : index
    %c0_9 = arith.constant 0 : index
    %11 = vector.load %arg5[%c0_8, %c0_9] : memref<16x4xbf16, #tpu.memory_space<vmem>>, vector<16x4xbf16>
    %cst_10 = arith.constant dense<0.000000e+00> : vector<16x16xf32>
    %12 = tpu.matmul %11, %10, %cst_10 {dimension_numbers = #tpu.dot_dimension_numbers<[1], [0], [0], [1], [0, 0, 1, 1], [], []>} : vector<16x4xbf16>, vector<4x16xbf16>, vector<16x16xf32> -> vector<16x16xf32>
    %13 = arith.addf %7, %12 : vector<16x16xf32>
    %14 = arith.truncf %13 : vector<16x16xf32> to vector<16x16xbf16>
    %c0_11 = arith.constant 0 : index
    %c0_12 = arith.constant 0 : index
    %15 = vector.load %arg6[%c0_11, %c0_12] : memref<16x1xbf16, #tpu.memory_space<vmem>>, vector<16x1xbf16>
    %16 = vector.broadcast %15 : vector<16x1xbf16> to vector<16x16xbf16>
    %17 = arith.addf %14, %16 : vector<16x16xbf16>
    %cst_13 = arith.constant 0.000000e+00 : bf16
    %18 = vector.broadcast %cst_13 : bf16 to vector<16x16xbf16>
    %19 = arith.maximumf %17, %18 : vector<16x16xbf16>
    %c0_14 = arith.constant 0 : index
    %c0_15 = arith.constant 0 : index
    %20 = vector.load %arg7[%c0_14, %c0_15] : memref<32x16xbf16, #tpu.memory_space<vmem>>, vector<32x16xbf16>
    %c0_16 = arith.constant 0 : index
    %c0_17 = arith.constant 0 : index
    %21 = vector.load %arg8[%c0_16, %c0_17] : memref<32x1xf32, #tpu.memory_space<vmem>>, vector<32x1xf32>
    %cst_18 = arith.constant dense<0.000000e+00> : vector<32x16xf32>
    %22 = tpu.matmul %20, %19, %cst_18 {dimension_numbers = #tpu.dot_dimension_numbers<[1], [0], [0], [1], [0, 0, 1, 1], [], []>} : vector<32x16xbf16>, vector<16x16xbf16>, vector<32x16xf32> -> vector<32x16xf32>
    %23 = vector.broadcast %21 : vector<32x1xf32> to vector<32x16xf32>
    %24 = arith.addf %22, %23 : vector<32x16xf32>
    %c0_19 = arith.constant 0 : index
    %c0_20 = arith.constant 0 : index
    %25 = vector.load %arg10[%c0_19, %c0_20] : memref<32x1xf32, #tpu.memory_space<vmem>>, vector<32x1xf32>
    %cst_21 = arith.constant dense<0xFF800000> : vector<32xf32>
    %26 = vector.multi_reduction <maximumf>, %24, %cst_21 [1] : vector<32x16xf32> to vector<32xf32>
    %27 = vector.shape_cast %26 : vector<32xf32> to vector<32x1xf32>
    %28 = arith.maximumf %25, %27 : vector<32x1xf32>
    %c0_22 = arith.constant 0 : index
    %c0_23 = arith.constant 0 : index
    %29 = vector.load %arg10[%c0_22, %c0_23] : memref<32x1xf32, #tpu.memory_space<vmem>>, vector<32x1xf32>
    tpu.vector_store %arg10[%c0_22, %c0_23], %28 {strides = array<i32>} : memref<32x1xf32, #tpu.memory_space<vmem>>, vector<32x1xf32>,
    %c0_i32_24 = arith.constant 0 : i32
    %30 = arith.cmpi eq, %arg1, %c0_i32_24 : i32
    %31 = arith.extui %30 : i1 to i32
    %c0_i32_25 = arith.constant 0 : i32
    %32 = arith.cmpi ne, %31, %c0_i32_25 : i32
    scf.if %32 {
      %c0_26 = arith.constant 0 : index
      %c0_27 = arith.constant 0 : index
      %33 = vector.load %arg10[%c0_26, %c0_27] : memref<32x1xf32, #tpu.memory_space<vmem>>, vector<32x1xf32>
      %34 = tpu.transpose %33, [1, 0] : vector<32x1xf32> -> vector<1x32xf32>
      %c0_28 = arith.constant 0 : index
      %c0_29 = arith.constant 0 : index
      %c0_30 = arith.constant 0 : index
      %35 = vector.load %arg9[%c0_28, %c0_29, %c0_30] : memref<1x1x32xf32, #tpu.memory_space<vmem>>, vector<1x1x32xf32>
      %36 = vector.shape_cast %35 : vector<1x1x32xf32> to vector<1x32xf32>
      %37 = vector.shape_cast %34 : vector<1x32xf32> to vector<1x1x32xf32>
      tpu.vector_store %arg9[%c0_28, %c0_29, %c0_30], %37 {strides = array<i32>} : memref<1x1x32xf32, #tpu.memory_space<vmem>>, vector<1x1x32xf32>,
    } else {
    }
    return
  }
  func.func @transform_0(%arg0: i32, %arg1: i32) -> (i32, i32, i32) {
    %c0_i32 = arith.constant 0 : i32
    %c0_i32_0 = arith.constant 0 : i32
    return %arg0, %c0_i32, %arg1 : i32, i32, i32
  }
  func.func @transform_1(%arg0: i32, %arg1: i32) -> (i32, i32, i32) {
    %c0_i32 = arith.constant 0 : i32
    %c0_i32_0 = arith.constant 0 : i32
    return %arg0, %c0_i32, %arg1 : i32, i32, i32
  }
  func.func @transform_2(%arg0: i32, %arg1: i32) -> (i32, i32) {
    %c0_i32 = arith.constant 0 : i32
    %c0_i32_0 = arith.constant 0 : i32
    %c0_i32_1 = arith.constant 0 : i32
    return %c0_i32, %c0_i32_0 : i32, i32
  }
  func.func @transform_3(%arg0: i32, %arg1: i32) -> (i32, i32) {
    %c0_i32 = arith.constant 0 : i32
    %c0_i32_0 = arith.constant 0 : i32
    %c0_i32_1 = arith.constant 0 : i32
    return %c0_i32, %c0_i32_0 : i32, i32
  }
  func.func @transform_4(%arg0: i32, %arg1: i32) -> (i32, i32) {
    %c0_i32 = arith.constant 0 : i32
    %c0_i32_0 = arith.constant 0 : i32
    %c0_i32_1 = arith.constant 0 : i32
    return %c0_i32, %c0_i32_0 : i32, i32
  }
  func.func @transform_5(%arg0: i32, %arg1: i32) -> (i32, i32) {
    %c0_i32 = arith.constant 0 : i32
    %c0_i32_0 = arith.constant 0 : i32
    %c0_i32_1 = arith.constant 0 : i32
    return %c0_i32, %c0_i32_0 : i32, i32
  }
  func.func @transform_6(%arg0: i32, %arg1: i32) -> (i32, i32) {
    %c0_i32 = arith.constant 0 : i32
    %c0_i32_0 = arith.constant 0 : i32
    %c0_i32_1 = arith.constant 0 : i32
    return %c0_i32, %c0_i32_0 : i32, i32
  }
  func.func @transform_7(%arg0: i32, %arg1: i32) -> (i32, i32, i32) {
    %c0_i32 = arith.constant 0 : i32
    %c0_i32_0 = arith.constant 0 : i32
    %c0_i32_1 = arith.constant 0 : i32
    return %arg0, %c0_i32, %c0_i32_0 : i32, i32, i32
  }
}

</mosaic_0001>

<llo_original>
// kernel: tpu_custom_call.1
$region0: #{tpu_custom_call.1}
  #allocation0 [shape = 'u32[]', space=smem, size = 0x4, offset = 0x4, fixed_abs, tag = 'smem constant byte address 0x4 - core index']
  #allocation1 [shape = 'u32[144,128]{1,0:T(1,128)}', space=vmem, size = 0x12000, scoped, tag = 'internal scratch']
  #allocation2 [shape = 'f32[32,1]{1,0:T(8,128)}', space=vmem, size = 0x4000, scoped, tag = 'scratch operand']
  %s0 = inlined_call_operand.vmem [shape: f32[2,3,16], index: 0, kind: input, shape index: {}]
  %s1 = inlined_call_operand.vmem [shape: f32[2,4,16], index: 1, kind: input, shape index: {}]
  %s2 = inlined_call_operand.vmem [shape: bf16[16,3], index: 2, kind: input, shape index: {}]
  %s3 = inlined_call_operand.vmem [shape: bf16[16,4], index: 3, kind: input, shape index: {}]
  %s4 = inlined_call_operand.vmem [shape: bf16[16,1], index: 4, kind: input, shape index: {}]
  %s5 = inlined_call_operand.vmem [shape: bf16[32,16], index: 5, kind: input, shape index: {}]
  %s6 = inlined_call_operand.vmem [shape: f32[32,1], index: 6, kind: input, shape index: {}]
  %s7 = inlined_call_operand.hbm [shape: f32[2,1,32], index: 7, kind: output, shape index: {}]
  %s8 = sld [smem:[#allocation0]]
  $region69: #{tpu_custom_call.1} parent=0
    _
  %s10 = ssub.s32 1, %s8
  %s11 = scalar_select 0, %s10, %s8
  $region1: #{tpu_custom_call.1} parent=0
    #allocation3 [shape = 'u8[1024]{0}', space=vmem, size = 0x400, scoped, tag = 'output window, operand 0']
    #allocation4 [shape = 's32[2]{0}', space=sflag, size = 0x8, scoped, tag = 'scoped memory for tpu_custom_call.1']
    %12 = vsyncpa [#allocation4], 0
    %s13 = scalar_lea.sflag [#allocation4], 1
    %14 = vsyncpa %s13, 0
    loop: start=0, step=1, limit=4
    $region2: #{tpu_custom_call.1} parent=1 // loop_pre_header
      _
    $region3: #{tpu_custom_call.1} parent=1 // loop_header
      %s16 = sphi 0, %s20
      %p17 = scmp.ge.s32.totalorder %s16, 4
      %s23 = sphi 0, %s35
      %s24 = sphi 0, %s31
      %s25 = sphi 0, %s23
      %s26 = sphi 0, %s24
      %s27 = sphi 0, %s25
      %s28 = sphi 0, %s26
      %s40 = sphi 0, %s42
      %s43 = sphi 0, %s40
      %s44 = sphi 0, %s43
      %s60 = sphi 0, %s44
      %s68 = sphi 0, %s70
      %s71 = sphi 0, %s68
      %s72 = sphi 0, %s71
      %s88 = sphi 0, %s72
      %s92 = sphi 0, %s92
      %s94 = sphi 0, %s92
      %s95 = sphi 0, %s94
      %s109 = sphi 0, %s95
      %s113 = sphi 0, %s113
      %s115 = sphi 0, %s113
      %s116 = sphi 0, %s115
      %s130 = sphi 0, %s116
      %s134 = sphi 0, %s134
      %s136 = sphi 0, %s134
      %s137 = sphi 0, %s136
      %s151 = sphi 0, %s137
      %s155 = sphi 0, %s155
      %s157 = sphi 0, %s155
      %s158 = sphi 0, %s157
      %s172 = sphi 0, %s158
      %s176 = sphi 0, %s176
      %s178 = sphi 0, %s176
      %s179 = sphi 0, %s178
      %s193 = sphi 0, %s179
      %s199 = sphi 0, %s201
      %s202 = sphi 0, %s199
      %s203 = sphi 0, %s202
      %s219 = sphi 0, %s203
    $region4: #{tpu_custom_call.1} parent=1 // loop_header_branch
      %19 = sbr.rel (%p17) target = $region8
    $region5: #{tpu_custom_call.1} parent=1 // loop_body
      %s21 = ssub.s32 %s16, 1
      %s22 = ssub.s32 %s16, 2
      %s29 = sadd.s32 1, %s24
      %p30 = scmp.ge.s32.totalorder %s29, 1
      %s31 = scalar_select %p30, 0, %s29
      %s32 = sadd.s32 1, %s23
      %s33 = scalar_select %p30, %s32, %s23
      %p34 = scmp.ge.s32.totalorder %s33, 2
      %s35 = scalar_select %p34, 0, %s33
      %s36 = ssub.s32 %s23, %s35
      %s37 = ssub.s32 %s24, %s31
      %s38 = sor.u32 %s36, %s37
      %p39 = scmp.eq.s32.totalorder %s38, 0
      %s41 = sadd.s32 %s40, 1
      %s42 = scalar_select %p39, %s40, %s41
      %p45 = pneg %p39
      %p46 = scmp.eq.s32.totalorder %s16, 1
      %p47 = por %p45, %p46
      %p48 = scmp.ne.s32.totalorder %s40, %s43
      %p49 = scmp.eq.s32.totalorder %s16, 0
      %p50 = por %p48, %p49
      %p51 = scmp.ne.s32.totalorder %s40, %s43
      %p52 = scmp.eq.s32.totalorder %s21, 1
      %p53 = por %p51, %p52
      %p54 = scmp.ne.s32.totalorder %s43, %s44
      %p55 = scmp.eq.s32.totalorder %s21, 0
      %p56 = por %p54, %p55
      %p57 = scmp.ne.s32.totalorder %s43, %s44
      %p58 = scmp.eq.s32.totalorder %s22, 1
      %p59 = por %p57, %p58
      %p61 = scmp.ne.s32.totalorder %s44, %s60
      %p62 = scmp.eq.s32.totalorder %s22, 0
      %p63 = por %p61, %p62
      %s64 = ssub.s32 %s23, %s35
      %s65 = ssub.s32 %s24, %s31
      %s66 = sor.u32 %s64, %s65
      %p67 = scmp.eq.s32.totalorder %s66, 0
      %s69 = sadd.s32 %s68, 1
      %s70 = scalar_select %p67, %s68, %s69
      %p73 = pneg %p67
      %p74 = scmp.eq.s32.totalorder %s16, 1
      %p75 = por %p73, %p74
      %p76 = scmp.ne.s32.totalorder %s68, %s71
      %p77 = scmp.eq.s32.totalorder %s16, 0
      %p78 = por %p76, %p77
      %p79 = scmp.ne.s32.totalorder %s68, %s71
      %p80 = scmp.eq.s32.totalorder %s21, 1
      %p81 = por %p79, %p80
      %p82 = scmp.ne.s32.totalorder %s71, %s72
      %p83 = scmp.eq.s32.totalorder %s21, 0
      %p84 = por %p82, %p83
      %p85 = scmp.ne.s32.totalorder %s71, %s72
      %p86 = scmp.eq.s32.totalorder %s22, 1
      %p87 = por %p85, %p86
      %p89 = scmp.ne.s32.totalorder %s72, %s88
      %p90 = scmp.eq.s32.totalorder %s22, 0
      %p91 = por %p89, %p90
      %s93 = sadd.s32 %s92, 1
      %p96 = scmp.eq.s32.totalorder %s16, 1
      %p97 = scmp.ne.s32.totalorder %s92, %s94
      %p98 = scmp.eq.s32.totalorder %s16, 0
      %p99 = por %p97, %p98
      %p100 = scmp.ne.s32.totalorder %s92, %s94
      %p101 = scmp.eq.s32.totalorder %s21, 1
      %p102 = por %p100, %p101
      %p103 = scmp.ne.s32.totalorder %s94, %s95
      %p104 = scmp.eq.s32.totalorder %s21, 0
      %p105 = por %p103, %p104
      %p106 = scmp.ne.s32.totalorder %s94, %s95
      %p107 = scmp.eq.s32.totalorder %s22, 1
      %p108 = por %p106, %p107
      %p110 = scmp.ne.s32.totalorder %s95, %s109
      %p111 = scmp.eq.s32.totalorder %s22, 0
      %p112 = por %p110, %p111
      %s114 = sadd.s32 %s113, 1
      %p117 = scmp.eq.s32.totalorder %s16, 1
      %p118 = scmp.ne.s32.totalorder %s113, %s115
      %p119 = scmp.eq.s32.totalorder %s16, 0
      %p120 = por %p118, %p119
      %p121 = scmp.ne.s32.totalorder %s113, %s115
      %p122 = scmp.eq.s32.totalorder %s21, 1
      %p123 = por %p121, %p122
      %p124 = scmp.ne.s32.totalorder %s115, %s116
      %p125 = scmp.eq.s32.totalorder %s21, 0
      %p126 = por %p124, %p125
      %p127 = scmp.ne.s32.totalorder %s115, %s116
      %p128 = scmp.eq.s32.totalorder %s22, 1
      %p129 = por %p127, %p128
      %p131 = scmp.ne.s32.totalorder %s116, %s130
      %p132 = scmp.eq.s32.totalorder %s22, 0
      %p133 = por %p131, %p132
      %s135 = sadd.s32 %s134, 1
      %p138 = scmp.eq.s32.totalorder %s16, 1
      %p139 = scmp.ne.s32.totalorder %s134, %s136
      %p140 = scmp.eq.s32.totalorder %s16, 0
      %p141 = por %p139, %p140
      %p142 = scmp.ne.s32.totalorder %s134, %s136
      %p143 = scmp.eq.s32.totalorder %s21, 1
      %p144 = por %p142, %p143
      %p145 = scmp.ne.s32.totalorder %s136, %s137
      %p146 = scmp.eq.s32.totalorder %s21, 0
      %p147 = por %p145, %p146
      %p148 = scmp.ne.s32.totalorder %s136, %s137
      %p149 = scmp.eq.s32.totalorder %s22, 1
      %p150 = por %p148, %p149
      %p152 = scmp.ne.s32.totalorder %s137, %s151
      %p153 = scmp.eq.s32.totalorder %s22, 0
      %p154 = por %p152, %p153
      %s156 = sadd.s32 %s155, 1
      %p159 = scmp.eq.s32.totalorder %s16, 1
      %p160 = scmp.ne.s32.totalorder %s155, %s157
      %p161 = scmp.eq.s32.totalorder %s16, 0
      %p162 = por %p160, %p161
      %p163 = scmp.ne.s32.totalorder %s155, %s157
      %p164 = scmp.eq.s32.totalorder %s21, 1
      %p165 = por %p163, %p164
      %p166 = scmp.ne.s32.totalorder %s157, %s158
      %p167 = scmp.eq.s32.totalorder %s21, 0
      %p168 = por %p166, %p167
      %p169 = scmp.ne.s32.totalorder %s157, %s158
      %p170 = scmp.eq.s32.totalorder %s22, 1
      %p171 = por %p169, %p170
      %p173 = scmp.ne.s32.totalorder %s158, %s172
      %p174 = scmp.eq.s32.totalorder %s22, 0
      %p175 = por %p173, %p174
      %s177 = sadd.s32 %s176, 1
      %p180 = scmp.eq.s32.totalorder %s16, 1
      %p181 = scmp.ne.s32.totalorder %s176, %s178
      %p182 = scmp.eq.s32.totalorder %s16, 0
      %p183 = por %p181, %p182
      %p184 = scmp.ne.s32.totalorder %s176, %s178
      %p185 = scmp.eq.s32.totalorder %s21, 1
      %p186 = por %p184, %p185
      %p187 = scmp.ne.s32.totalorder %s178, %s179
      %p188 = scmp.eq.s32.totalorder %s21, 0
      %p189 = por %p187, %p188
      %p190 = scmp.ne.s32.totalorder %s178, %s179
      %p191 = scmp.eq.s32.totalorder %s22, 1
      %p192 = por %p190, %p191
      %p194 = scmp.ne.s32.totalorder %s179, %s193
      %p195 = scmp.eq.s32.totalorder %s22, 0
      %p196 = por %p194, %p195
      %s197 = ssub.s32 %s23, %s35
      %p198 = scmp.eq.s32.totalorder %s197, 0
      %s200 = sadd.s32 %s199, 1
      %s201 = scalar_select %p198, %s199, %s200
      %p204 = pneg %p198
      %p205 = scmp.eq.s32.totalorder %s16, 1
      %p206 = por %p204, %p205
      %p207 = scmp.ne.s32.totalorder %s199, %s202
      %p208 = scmp.eq.s32.totalorder %s16, 0
      %p209 = por %p207, %p208
      %p210 = scmp.ne.s32.totalorder %s199, %s202
      %p211 = scmp.eq.s32.totalorder %s21, 1
      %p212 = por %p210, %p211
      %p213 = scmp.ne.s32.totalorder %s202, %s203
      %p214 = scmp.eq.s32.totalorder %s21, 0
      %p215 = por %p213, %p214
      %p216 = scmp.ne.s32.totalorder %s202, %s203
      %p217 = scmp.eq.s32.totalorder %s22, 1
      %p218 = por %p216, %p217
      %p220 = scmp.ne.s32.totalorder %s203, %s219
      %p221 = scmp.eq.s32.totalorder %s22, 0
      %p222 = por %p220, %p221
      %p223 = scmp.le.s32.totalorder 1, %s16
      %p224 = scmp.lt.s32.totalorder %s16, 3
      %p225 = pnand %p223, %p224
      %p226 = pneg %p225
      // Predicated region
      $region9: #{tpu_custom_call.1} parent=5 // pred_check
        _
      $region10: #{tpu_custom_call.1} parent=5 // pred_check_branch
        %228 = sbr.rel (%p225) target = $region12
      $region11: #{tpu_custom_call.1} parent=5 // pred_region
        %s229 = ssub.s32 %s16, 1
        // Predicated region
        $region13: #{tpu_custom_call.1} parent=11 // pred_check
          %p230 = pneg %p105
        $region14: #{tpu_custom_call.1} parent=11 // pred_check_branch
          %232 = sbr.rel (%p230) target = $region16
        $region15: #{tpu_custom_call.1} parent=11 // pred_region
          _
        $region16: #{tpu_custom_call.1} parent=11 // pred_fallthru
          _
        // Predicated region
        $region17: #{tpu_custom_call.1} parent=11 // pred_check
          %p233 = pneg %p126
        $region18: #{tpu_custom_call.1} parent=11 // pred_check_branch
          %235 = sbr.rel (%p233) target = $region20
        $region19: #{tpu_custom_call.1} parent=11 // pred_region
          _
        $region20: #{tpu_custom_call.1} parent=11 // pred_fallthru
          _
        // Predicated region
        $region21: #{tpu_custom_call.1} parent=11 // pred_check
          %p236 = pneg %p147
        $region22: #{tpu_custom_call.1} parent=11 // pred_check_branch
          %238 = sbr.rel (%p236) target = $region24
        $region23: #{tpu_custom_call.1} parent=11 // pred_region
          _
        $region24: #{tpu_custom_call.1} parent=11 // pred_fallthru
          _
        // Predicated region
        $region25: #{tpu_custom_call.1} parent=11 // pred_check
          %p239 = pneg %p168
        $region26: #{tpu_custom_call.1} parent=11 // pred_check_branch
          %241 = sbr.rel (%p239) target = $region28
        $region27: #{tpu_custom_call.1} parent=11 // pred_region
          _
        $region28: #{tpu_custom_call.1} parent=11 // pred_fallthru
          _
        // Predicated region
        $region29: #{tpu_custom_call.1} parent=11 // pred_check
          %p242 = pneg %p189
        $region30: #{tpu_custom_call.1} parent=11 // pred_check_branch
          %244 = sbr.rel (%p242) target = $region32
        $region31: #{tpu_custom_call.1} parent=11 // pred_region
          _
        $region32: #{tpu_custom_call.1} parent=11 // pred_fallthru
          _
      $region12: #{tpu_custom_call.1} parent=5 // pred_fallthru
        _
      %p245 = scmp.lt.s32.totalorder %s16, 2
      // Predicated region
      $region33: #{tpu_custom_call.1} parent=5 // pred_check
        %p246 = pneg %p245
      $region34: #{tpu_custom_call.1} parent=5 // pred_check_branch
        %248 = sbr.rel (%p246) target = $region36
      $region35: #{tpu_custom_call.1} parent=5 // pred_region
        // Predicated region
        $region37: #{tpu_custom_call.1} parent=35 // pred_check
          %p249 = pneg %p50
        $region38: #{tpu_custom_call.1} parent=35 // pred_check_branch
          %251 = sbr.rel (%p249) target = $region40
        $region39: #{tpu_custom_call.1} parent=35 // pred_region
          %p252 = scmp.lt.s32.totalorder %s23, 1
          %s253 = scalar_select %p252, %s23, 1
          %p254 = scmp.lt.s32.totalorder %s24, 0
          %s255 = scalar_select %p254, %s24, 0
          %s256 = sadd.s32 %s255, %s253
          %s257 = smul.addr %s256, 4
          %s258 = scalar_lea.vmem %s0, %s257
        $region40: #{tpu_custom_call.1} parent=35 // pred_fallthru
          _
        // Predicated region
        $region41: #{tpu_custom_call.1} parent=35 // pred_check
          %p259 = pneg %p78
        $region42: #{tpu_custom_call.1} parent=35 // pred_check_branch
          %261 = sbr.rel (%p259) target = $region44
        $region43: #{tpu_custom_call.1} parent=35 // pred_region
          %p262 = scmp.lt.s32.totalorder %s23, 1
          %s263 = scalar_select %p262, %s23, 1
          %p264 = scmp.lt.s32.totalorder %s24, 0
          %s265 = scalar_select %p264, %s24, 0
          %s266 = sadd.s32 %s265, %s263
          %s267 = smul.addr %s266, 4
          %s268 = scalar_lea.vmem %s1, %s267
        $region44: #{tpu_custom_call.1} parent=35 // pred_fallthru
          _
      $region36: #{tpu_custom_call.1} parent=5 // pred_fallthru
        _
      %p269 = scmp.le.s32.totalorder 1, %s16
      %p270 = scmp.lt.s32.totalorder %s16, 3
      %p271 = pnand %p269, %p270
      %p272 = pneg %p271
      // Predicated region
      $region45: #{tpu_custom_call.1} parent=5 // pred_check
        _
      $region46: #{tpu_custom_call.1} parent=5 // pred_check_branch
        %274 = sbr.rel (%p271) target = $region48
      $region47: #{tpu_custom_call.1} parent=5 // pred_region
        %s275 = ssub.s32 %s16, 1
        %p276 = scmp.lt.s32.totalorder %s25, 1
        %s277 = scalar_select %p276, %s25, 1
        %p278 = scmp.lt.s32.totalorder %s26, 0
        %s279 = scalar_select %p278, %s26, 0
        %s280 = sadd.s32 %s279, %s277
        %s281 = smul.addr %s280, 4
        %s282 = scalar_lea.vmem %s0, %s281
        %p283 = pneg %p56
        %p284 = pneg %p53
        %p285 = scmp.lt.s32.totalorder %s25, 1
        %s286 = scalar_select %p285, %s25, 1
        %p287 = scmp.lt.s32.totalorder %s26, 0
        %s288 = scalar_select %p287, %s26, 0
        %s289 = sadd.s32 %s288, %s286
        %s290 = smul.addr %s289, 4
        %s291 = scalar_lea.vmem %s1, %s290
        %p292 = pneg %p84
        %p293 = pneg %p81
        %p294 = pneg %p105
        %p295 = pneg %p102
        %p296 = pneg %p126
        %p297 = pneg %p123
        %p298 = pneg %p147
        %p299 = pneg %p144
        %p300 = pneg %p168
        %p301 = pneg %p165
        %p302 = pneg %p189
        %p303 = pneg %p186
        %p304 = pneg %p215
        %p305 = pneg %p212
        %s306 = sand.u32 %s202, 1
        %s307 = scalar_lea.sflag [#allocation4], %s306
        %s308 = sand.u32 %s202, 1
        %s309 = scalar_lea.vmem [#allocation3], %s308
        %p310 = scmp.lt.s32.totalorder %s25, 1
        %s311 = scalar_select %p310, %s25, 1
        %p312 = scmp.lt.s32.totalorder %s26, 0
        %s313 = scalar_select %p312, %s26, 0
        %s314 = sadd.s32 %s313, %s311
        %s315 = smul.addr %s314, 4
        %s316 = scalar_lea.vmem %s0, %s315
        %p317 = scmp.lt.s32.totalorder %s25, 1
        %s318 = scalar_select %p317, %s25, 1
        %p319 = scmp.lt.s32.totalorder %s26, 0
        %s320 = scalar_select %p319, %s26, 0
        %s321 = sadd.s32 %s320, %s318
        %s322 = smul.addr %s321, 4
        %s323 = scalar_lea.vmem %s1, %s322
        %p325 = scmp.eq.s32.totalorder %s26, 0
        // Predicated region
        $region49: #{tpu_custom_call.1} parent=47 // pred_check
          %p326 = pneg %p325
        $region50: #{tpu_custom_call.1} parent=47 // pred_check_branch
          %328 = sbr.rel (%p326) target = $region52
        $region51: #{tpu_custom_call.1} parent=47 // pred_region
          %vm329 = vcmask 7168
          %330 = vst.msk [vmem:[#allocation2] sm:$0xff] %vm329, -inf
          %331 = vst.msk [vmem:[#allocation2 + $0x8] sm:$0xff] %vm329, -inf
          %332 = vst.msk [vmem:[#allocation2 + $0x10] sm:$0xff] %vm329, -inf
          %333 = vst.msk [vmem:[#allocation2 + $0x18] sm:$0xff] %vm329, -inf
        $region52: #{tpu_custom_call.1} parent=47 // pred_fallthru
          _
        %v334 = vld [vmem:[%s316] sm:$0x7]
        %v335 = vpack.c.bf16 %v334, %v334
        %v336 = vld [vmem:[%s2] sm:$0xf]
        %v337 = vld [vmem:[%s2 + $0x4] sm:$0xf]
        %v338 = vld [vmem:[%s323] sm:$0xf]
        %v339 = vpack.c.bf16 %v338, %v338
        %v340 = vld [vmem:[%s3] sm:$0xf]
        %v341 = vld [vmem:[%s3 + $0x4] sm:$0xf]
        %v344 = vunpack.c.l.b16 %v340
        %v345 = vunpack.c.l.b16 %v341
        %v346 = vpack.c.b16 %v345, %v344
        %vm347 = vcmask 31744
        %v349 = vsel %vm347, %v346, 0
        %vm351 = vcmask 1041408
        %v353 = vsel %vm351, %v339, 0
        %355 = vmatprep.subr.bf16.mxu0 0
        %356 = vmatpush1.bf16.msra.mxu0 %v353
        %357 = vmatprep.subr.bf16.mxu0 0
        %358 = vmatpush1.bf16.msra.mxu0 0
        %359 = vmatprep.subr.bf16.mxu0 0
        %360 = vmatpush1.bf16.msra.mxu0 0
        %361 = vmatprep.subr.bf16.mxu0 0
        %362 = vmatpush1.bf16.msra.mxu0 0
        %363 = vmatprep.subr.bf16.mxu0 0
        %364 = vmatpush1.bf16.msra.mxu0 0
        %365 = vmatprep.subr.bf16.mxu0 0
        %366 = vmatpush1.bf16.msra.mxu0 0
        %367 = vmatprep.subr.bf16.mxu0 0
        %368 = vmatpush1.bf16.msra.mxu0 0
        %369 = vmatprep.subr.bf16.mxu0 0
        %370 = vmatpush1.bf16.msra.mxu0 0
        %371 = vmatprep.subr.bf16.mxu0 0
        %372 = vmatpush1.bf16.msra.mxu0 0
        %373 = vmatprep.subr.bf16.mxu0 0
        %374 = vmatpush1.bf16.msra.mxu0 0
        %375 = vmatprep.subr.bf16.mxu0 0
        %376 = vmatpush1.bf16.msra.mxu0 0
        %377 = vmatprep.subr.bf16.mxu0 0
        %378 = vmatpush1.bf16.msra.mxu0 0
        %379 = vmatprep.subr.bf16.mxu0 0
        %380 = vmatpush1.bf16.msra.mxu0 0
        %381 = vmatprep.subr.bf16.mxu0 0
        %382 = vmatpush1.bf16.msra.mxu0 0
        %383 = vmatprep.subr.bf16.mxu0 0
        %384 = vmatpush1.bf16.msra.mxu0 0
        %385 = vmatprep.subr.bf16.mxu0 0
        %386 = vmatpush1.bf16.msra.mxu0 0
        %387 = vmatprep.mubr.bf16.mxu0 0
        %388 = vmatmul.mubr.bf16.gmra.mrb[0].mxu0 %v349
        %v389 = vpop.f32.mrb[0].mxu0
        %v390 = vadd.f32 0.0, %v389
        %v391 = vpop.f32.mrb[0].mxu0
        %v392 = vpop.f32.mrb[0].mxu0
        %v393 = vadd.f32 0.0, %v392
        %v394 = vpop.f32.mrb[0].mxu0
        %395 = vdwg.mxu0
        %v398 = vunpack.c.l.b16 %v336
        %v399 = vunpack.c.l.b16 %v337
        %v400 = vpack.c.b16 %v399, %v398
        %vm401 = vcmask 23552
        %v403 = vsel %vm401, %v400, 0
        %vm405 = vcmask 1040384
        %v406 = vsel %vm405, 4294967295, 65535
        %v407 = vsel %vm351, %v406, 0
        %v409 = vand.u32 %v335, %v407
        %411 = vmatprep.subr.bf16.mxu0 0
        %412 = vmatpush1.bf16.msra.mxu0 %v409
        %413 = vmatprep.subr.bf16.mxu0 0
        %414 = vmatpush1.bf16.msra.mxu0 0
        %415 = vmatprep.subr.bf16.mxu0 0
        %416 = vmatpush1.bf16.msra.mxu0 0
        %417 = vmatprep.subr.bf16.mxu0 0
        %418 = vmatpush1.bf16.msra.mxu0 0
        %419 = vmatprep.subr.bf16.mxu0 0
        %420 = vmatpush1.bf16.msra.mxu0 0
        %421 = vmatprep.subr.bf16.mxu0 0
        %422 = vmatpush1.bf16.msra.mxu0 0
        %423 = vmatprep.subr.bf16.mxu0 0
        %424 = vmatpush1.bf16.msra.mxu0 0
        %425 = vmatprep.subr.bf16.mxu0 0
        %426 = vmatpush1.bf16.msra.mxu0 0
        %427 = vmatprep.subr.bf16.mxu0 0
        %428 = vmatpush1.bf16.msra.mxu0 0
        %429 = vmatprep.subr.bf16.mxu0 0
        %430 = vmatpush1.bf16.msra.mxu0 0
        %431 = vmatprep.subr.bf16.mxu0 0
        %432 = vmatpush1.bf16.msra.mxu0 0
        %433 = vmatprep.subr.bf16.mxu0 0
        %434 = vmatpush1.bf16.msra.mxu0 0
        %435 = vmatprep.subr.bf16.mxu0 0
        %436 = vmatpush1.bf16.msra.mxu0 0
        %437 = vmatprep.subr.bf16.mxu0 0
        %438 = vmatpush1.bf16.msra.mxu0 0
        %439 = vmatprep.subr.bf16.mxu0 0
        %440 = vmatpush1.bf16.msra.mxu0 0
        %441 = vmatprep.subr.bf16.mxu0 0
        %442 = vmatpush1.bf16.msra.mxu0 0
        %443 = vmatprep.mubr.bf16.mxu0 0
        %444 = vmatmul.mubr.bf16.gmra.mrb[0].mxu0 %v403
        %v445 = vpop.f32.mrb[0].mxu0
        %v446 = vadd.f32 %v390, %v445
        %v447 = vpop.f32.mrb[0].mxu0
        %v448 = vpop.f32.mrb[0].mxu0
        %v449 = vadd.f32 %v393, %v448
        %v450 = vpop.f32.mrb[0].mxu0
        %451 = vdwg.mxu0
        %v452 = vpack.c.bf16 %v449, %v446
        %v453 = vld [vmem:[%s4] sm:$0xf]
        %v454 = vld [vmem:[%s4 + $0x4] sm:$0xf]
        %456 = vset.pattern.permute.xlu0 0
        %457 = vperm.xlu0 %456, %v453
        %v458 = vpop.permute.xlu0 %457
        %v461 = vunpack.c.l.s4 839922192
        %v462 = vunpack.c.0.s8 %v461
        %v463 = vlaneseq
        %v464 = vshrl.u32 %v463, 7
        %v465 = vsub.s32 %v462, %v464
        %v466 = vrot.slane %v458, %v465
        %468 = vset.pattern.permute.xlu0 0
        %469 = vperm.xlu0 %468, %v454
        %v470 = vpop.permute.xlu0 %469
        %v473 = vunpack.c.l.s4 839922192
        %v474 = vunpack.c.0.s8 %v473
        %v475 = vlaneseq
        %v476 = vshrl.u32 %v475, 7
        %v477 = vsub.s32 %v474, %v476
        %v478 = vrot.slane %v470, %v477
        %v481 = vunpack.c.l.b16 %v466
        %v482 = vunpack.c.l.b16 %v478
        %v483 = vpack.c.b16 %v482, %v481
        %v485 = vadd.bf16 %v452, %v483
        %v486 = vmax.bf16 %v485, 0
        %v487 = vld [vmem:[%s5] sm:$0xf]
        %v488 = vld [vmem:[%s5 + $0x4] sm:$0xf]
        %v489 = vld [vmem:[%s5 + $0x8] sm:$0xf]
        %v490 = vld [vmem:[%s5 + $0xc] sm:$0xf]
        %v491 = vld [vmem:[%s6] sm:$0xff]
        %v492 = vld [vmem:[%s6 + $0x8] sm:$0xff]
        %v493 = vld [vmem:[%s6 + $0x10] sm:$0xff]
        %v494 = vld [vmem:[%s6 + $0x18] sm:$0xff]
        %496 = vset.pattern.permute.xlu0 0
        %497 = vperm.xlu0 %496, %v491
        %v498 = vpop.permute.xlu0 %497
        %501 = vset.pattern.permute.xlu0 0
        %502 = vperm.xlu0 %501, %v492
        %v503 = vpop.permute.xlu0 %502
        %506 = vset.pattern.permute.xlu0 0
        %507 = vperm.xlu0 %506, %v493
        %v508 = vpop.permute.xlu0 %507
        %511 = vset.pattern.permute.xlu0 0
        %512 = vperm.xlu0 %511, %v494
        %v513 = vpop.permute.xlu0 %512
        %v519 = vunpack.c.l.b16 %v487
        %v520 = vunpack.c.l.b16 %v488
        %v521 = vunpack.c.l.b16 %v489
        %v522 = vunpack.c.l.b16 %v490
        %v523 = vpack.c.b16 %v520, %v519
        %v524 = vpack.c.b16 %v522, %v521
        %vm525 = vcmask 130048
        %v527 = vsel %vm525, %v523, 0
        %v530 = vsel %vm525, %v524, 0
        %532 = vmatprep.subr.bf16.mxu0 0
        %533 = vmatpush1.bf16.msra.mxu0 %v486
        %534 = vmatprep.subr.bf16.mxu0 0
        %535 = vmatpush1.bf16.msra.mxu0 0
        %536 = vmatprep.subr.bf16.mxu0 0
        %537 = vmatpush1.bf16.msra.mxu0 0
        %538 = vmatprep.subr.bf16.mxu0 0
        %539 = vmatpush1.bf16.msra.mxu0 0
        %540 = vmatprep.subr.bf16.mxu0 0
        %541 = vmatpush1.bf16.msra.mxu0 0
        %542 = vmatprep.subr.bf16.mxu0 0
        %543 = vmatpush1.bf16.msra.mxu0 0
        %544 = vmatprep.subr.bf16.mxu0 0
        %545 = vmatpush1.bf16.msra.mxu0 0
        %546 = vmatprep.subr.bf16.mxu0 0
        %547 = vmatpush1.bf16.msra.mxu0 0
        %548 = vmatprep.subr.bf16.mxu0 0
        %549 = vmatpush1.bf16.msra.mxu0 0
        %550 = vmatprep.subr.bf16.mxu0 0
        %551 = vmatpush1.bf16.msra.mxu0 0
        %552 = vmatprep.subr.bf16.mxu0 0
        %553 = vmatpush1.bf16.msra.mxu0 0
        %554 = vmatprep.subr.bf16.mxu0 0
        %555 = vmatpush1.bf16.msra.mxu0 0
        %556 = vmatprep.subr.bf16.mxu0 0
        %557 = vmatpush1.bf16.msra.mxu0 0
        %558 = vmatprep.subr.bf16.mxu0 0
        %559 = vmatpush1.bf16.msra.mxu0 0
        %560 = vmatprep.subr.bf16.mxu0 0
        %561 = vmatpush1.bf16.msra.mxu0 0
        %562 = vmatprep.subr.bf16.mxu0 0
        %563 = vmatpush1.bf16.msra.mxu0 0
        %564 = vmatprep.mubr.bf16.mxu0 0
        %565 = vmatmul.mubr.bf16.gmra.mrb[0].mxu0 %v527
        %v566 = vpop.f32.mrb[0].mxu0
        %v567 = vadd.f32 %v498, %v566
        %v568 = vpop.f32.mrb[0].mxu0
        %v569 = vpop.f32.mrb[0].mxu0
        %v570 = vadd.f32 %v503, %v569
        %v571 = vpop.f32.mrb[0].mxu0
        %572 = vmatprep.mubr.bf16.mxu0 0
        %573 = vmatmul.mubr.bf16.gmra.mrb[0].mxu0 %v530
        %v574 = vpop.f32.mrb[0].mxu0
        %v575 = vadd.f32 %v508, %v574
        %v576 = vpop.f32.mrb[0].mxu0
        %v577 = vpop.f32.mrb[0].mxu0
        %v578 = vadd.f32 %v513, %v577
        %v579 = vpop.f32.mrb[0].mxu0
        %580 = vdwg.mxu0
        %v581 = vld [vmem:[#allocation2] sm:$0xff]
        %v582 = vld [vmem:[#allocation2 + $0x8] sm:$0xff]
        %v583 = vld [vmem:[#allocation2 + $0x10] sm:$0xff]
        %v584 = vld [vmem:[#allocation2 + $0x18] sm:$0xff]
        %v585 = vsel %vm525, %v567, -inf
        %586 = vmax.xlane.f32.xlu0 %v585
        %v587 = vpop.xlane.xlu0 %586
        %v588 = vsel %vm525, %v570, -inf
        %589 = vmax.xlane.f32.xlu0 %v588
        %v590 = vpop.xlane.xlu0 %589
        %v591 = vsel %vm525, %v575, -inf
        %592 = vmax.xlane.f32.xlu0 %v591
        %v593 = vpop.xlane.xlu0 %592
        %v594 = vsel %vm525, %v578, -inf
        %595 = vmax.xlane.f32.xlu0 %v594
        %v596 = vpop.xlane.xlu0 %595
        %v597 = vmax.f32 %v581, %v587
        %v598 = vmax.f32 %v582, %v590
        %v599 = vmax.f32 %v583, %v593
        %v600 = vmax.f32 %v584, %v596
        %vm601 = vcmask 7168
        %602 = vst.msk [vmem:[#allocation2] sm:$0xff] %vm601, %v597
        %603 = vst.msk [vmem:[#allocation2 + $0x8] sm:$0xff] %vm601, %v598
        %604 = vst.msk [vmem:[#allocation2 + $0x10] sm:$0xff] %vm601, %v599
        %605 = vst.msk [vmem:[#allocation2 + $0x18] sm:$0xff] %vm601, %v600
        // Predicated region
        $region53: #{tpu_custom_call.1} parent=47 // pred_check
          %p606 = pneg %p325
        $region54: #{tpu_custom_call.1} parent=47 // pred_check_branch
          %608 = sbr.rel (%p606) target = $region56
        $region55: #{tpu_custom_call.1} parent=47 // pred_region
          %v609 = vld [vmem:[#allocation2] sm:$0xff]
          %v610 = vld [vmem:[#allocation2 + $0x8] sm:$0xff]
          %v611 = vld [vmem:[#allocation2 + $0x10] sm:$0xff]
          %v612 = vld [vmem:[#allocation2 + $0x18] sm:$0xff]
          %613 = vxpose.xlu0.b32.start [1/16] %v609, 128
          %614 = vxpose.xlu0.b32.cont [2/16] %v610, 128
          %615 = vxpose.xlu0.b32.cont [3/16] %v611, 128
          %616 = vxpose.xlu0.b32.cont [4/16] %v612, 128
          %617 = vxpose.xlu0.b32.cont [5/16] 0.0, 128
          %618 = vxpose.xlu0.b32.cont [6/16] 0.0, 128
          %619 = vxpose.xlu0.b32.cont [7/16] 0.0, 128
          %620 = vxpose.xlu0.b32.cont [8/16] 0.0, 128
          %621 = vxpose.xlu0.b32.cont [9/16] 0.0, 128
          %622 = vxpose.xlu0.b32.cont [10/16] 0.0, 128
          %623 = vxpose.xlu0.b32.cont [11/16] 0.0, 128
          %624 = vxpose.xlu0.b32.cont [12/16] 0.0, 128
          %625 = vxpose.xlu0.b32.cont [13/16] 0.0, 128
          %626 = vxpose.xlu0.b32.cont [14/16] 0.0, 128
          %627 = vxpose.xlu0.b32.cont [15/16] 0.0, 128
          %628 = vxpose.xlu0.b32.end [16/16] 0.0, 128
          %v629 = vpop.trf.xlu0
          %v630 = vpop.trf.xlu0
          %v631 = vpop.trf.xlu0
          %v632 = vpop.trf.xlu0
          %v633 = vpop.trf.xlu0
          %v634 = vpop.trf.xlu0
          %v635 = vpop.trf.xlu0
          %v636 = vpop.trf.xlu0
          %v637 = vpop.trf.xlu0
          %v638 = vpop.trf.xlu0
          %v639 = vpop.trf.xlu0
          %v640 = vpop.trf.xlu0
          %v641 = vpop.trf.xlu0
          %v642 = vpop.trf.xlu0
          %v643 = vpop.trf.xlu0
          %v644 = vpop.trf.xlu0
          %vm645 = vcmask 253952
          %646 = vst.msk [vmem:[%s309] sm:$0x1] %vm645, %v629
        $region56: #{tpu_custom_call.1} parent=47 // pred_fallthru
          _
        %s647 = sand.u32 %s202, 1
        %s648 = scalar_lea.sflag [#allocation4], %s647
        %s649 = sand.u32 %s202, 1
        %s650 = scalar_lea.vmem [#allocation3], %s649
        // Predicated region
        $region57: #{tpu_custom_call.1} parent=47 // pred_check
          %p651 = pneg %p212
        $region58: #{tpu_custom_call.1} parent=47 // pred_check_branch
          %653 = sbr.rel (%p651) target = $region60
        $region59: #{tpu_custom_call.1} parent=47 // pred_region
          %s655 = ssub.s32 16, 16
          %656 = vsyncadd %s648, %s655
          %s657 = smul.addr %s25, 16
          %s658 = scalar_lea.hbm %s7, %s657
          %s660 = sshll.u32 %s650, 4
          %s661 = int_to_ptr.vmem [resolvable:$true] %s660
          %663 = dma.vmem_to_hbm [thread:$0]  %s661, 16, %s658, %s648
        $region60: #{tpu_custom_call.1} parent=47 // pred_fallthru
          _
      $region48: #{tpu_custom_call.1} parent=5 // pred_fallthru
        _
      %p664 = scmp.le.s32.totalorder 2, %s16
      // Predicated region
      $region61: #{tpu_custom_call.1} parent=5 // pred_check
        %p665 = pneg %p664
      $region62: #{tpu_custom_call.1} parent=5 // pred_check_branch
        %667 = sbr.rel (%p665) target = $region64
      $region63: #{tpu_custom_call.1} parent=5 // pred_region
        %s668 = ssub.s32 %s16, 2
        // Predicated region
        $region65: #{tpu_custom_call.1} parent=63 // pred_check
          %p669 = pneg %p218
        $region66: #{tpu_custom_call.1} parent=63 // pred_check_branch
          %671 = sbr.rel (%p669) target = $region68
        $region67: #{tpu_custom_call.1} parent=63 // pred_region
          %s672 = sand.u32 %s203, 1
          %s673 = scalar_lea.sflag [#allocation4], %s672
          %s674 = sand.u32 %s203, 1
          %s675 = scalar_lea.vmem [#allocation3], %s674
          %676 = dma.done %s673, 16
        $region68: #{tpu_custom_call.1} parent=63 // pred_fallthru
          _
      $region64: #{tpu_custom_call.1} parent=5 // pred_fallthru
        _
    $region6: #{tpu_custom_call.1} parent=1 // loop_footer
      %s20 = sadd.s32 1, %s16
    $region7: #{tpu_custom_call.1} parent=1 // loop_footer_branch
      %15 = sbr.rel target = $region3
    $region8: #{tpu_custom_call.1} parent=1 // loop_exit
      _
    %677 = vsyncpa [#allocation4], 1
    %s678 = scalar_lea.sflag [#allocation4], 1
    %679 = vsyncpa %s678, 1

</llo_original>
